<compile_context>
chip_gen: v6e
topology: v6e:2x2x1
jax: 0.10.0
libtpu: 0.0.40
codegen_flags: <defaults>
</compile_context>

<pallas_src>
import functools

import jax
import jax.numpy as jnp
from jax import lax
from jax.experimental import pallas as pl
from jax.experimental.pallas import tpu as pltpu

LANE = 128


def _round_up(x, m):
    return ((x + m - 1) // m) * m


def _vmem_limit_bytes():
    """Generation-aware scoped-VMEM limit (~7/8 of physical VMEM)."""
    cap = None
    try:
        info = pltpu.get_tpu_info()
        cap = getattr(info, "vmem_capacity_bytes", None)
    except Exception:
        cap = None
    if not cap:
        cap = 64 * 1024 * 1024          # conservative (v7x-sized) fallback
    return int(cap) * 7 // 8            # ~112 MiB v5e/v6e, ~56 MiB v7x


def _pick_tile_m(m_total, cap=1024):
    """Largest divisor of m_total that is a multiple of 8 (<= cap), else full."""
    best = 0
    t = 8
    while t <= min(cap, m_total):
        if m_total % t == 0:
            best = t
        t += 8
    return best if best > 0 else m_total


# --------------------------------------------------------------------------
# Kernels
# --------------------------------------------------------------------------
def _gemm_bn_relu_kernel(x_ref, w_ref, affine_ref, o_ref, *, has_relu):
    # x_ref:      (TILE_M, K_p)    bf16 im2col activations (batch squeezed)
    # w_ref:      (K_p, TILE_CO)   bf16 im2col weights
    # affine_ref: (2, TILE_CO)     f32  -- row 0 = BN scale, row 1 = shift
    # o_ref:      (TILE_M, TILE_CO)
    acc = jnp.dot(x_ref[...], w_ref[...], preferred_element_type=jnp.float32)
    acc = acc * affine_ref[0:1, :] + affine_ref[1:2, :]
    if has_relu:
        acc = jnp.maximum(acc, 0.0)
    o_ref[...] = acc.astype(o_ref.dtype)


def _direct_conv_bn_relu_kernel(x_ref, w_ref, affine_ref, o_ref, acc_ref, *,
                                KH, KW, SH, SW, TILE_HO, Wo, has_relu):
    # x_ref:      (Hp, Wp, Cin_p)          whole padded image (batch squeezed), bf16
    # w_ref:      (KH, KW, Cin_p, TILE_CO) bf16
    # affine_ref: (2, TILE_CO)             f32 (row 0 scale, row 1 shift)
    # o_ref:      (TILE_HO * Wo, TILE_CO)
    # acc_ref:    VMEM scratch (TILE_HO * Wo, TILE_CO) f32
    hi = pl.program_id(2)
    row0 = pl.multiple_of(hi * (TILE_HO * SH), TILE_HO * SH)
    cin = x_ref.shape[-1]

    acc_ref[...] = jnp.zeros_like(acc_ref)
    for kh in range(KH):
        rows = (pl.ds(row0 + kh, TILE_HO) if SH == 1
                else pl.ds(row0 + kh, TILE_HO, SH))
        for kw in range(KW):
            cols = pl.ds(kw, Wo) if SW == 1 else pl.ds(kw, Wo, SW)
            patch = x_ref[rows, cols, :]                  # (TILE_HO, Wo, Cin_p)
            acc_ref[...] += jnp.dot(patch.reshape(TILE_HO * Wo, cin),
                                    w_ref[kh, kw],
                                    preferred_element_type=jnp.float32)

    acc = acc_ref[...] * affine_ref[0:1, :] + affine_ref[1:2, :]
    if has_relu:
        acc = jnp.maximum(acc, 0.0)
    o_ref[...] = acc.astype(o_ref.dtype)


# --------------------------------------------------------------------------
# Wrapper
# --------------------------------------------------------------------------
def conv_bn_relu_forward(x_nchw, weight_oihw, conv_bias,
                         gamma, beta, running_mean, running_var,
                         *, stride=1, padding=1, groups=1,
                         has_bn=True, has_relu=True, eps=1e-5):
    assert groups == 1, "TODO(synk): grouped convolution not implemented"

    N, Cin, H, W = x_nchw.shape
    Cout, Cin_w, KH, KW = weight_oihw.shape
    assert Cin_w == Cin
    SH = SW = int(stride)
    P = int(padding)
    Ho = (H + 2 * P - KH) // SH + 1
    Wo = (W + 2 * P - KW) // SW + 1
    Hp, Wp = H + 2 * P, W + 2 * P
    M_total = Ho * Wo

    Cout_p = _round_up(Cout, LANE)
    TILE_CO = 256 if Cout_p % 256 == 0 else 128
    n_co = Cout_p // TILE_CO

    out_dtype = x_nchw.dtype
    if conv_bias is None:
        conv_bias = jnp.zeros((Cout,), jnp.float32)

    # BN folded to per-channel f32 scale/shift, applied on the f32 accumulator.
    if has_bn:
        inv_std = 1.0 / jnp.sqrt(running_var.astype(jnp.float32) + eps)
        scale = gamma.astype(jnp.float32) * inv_std
        shift = beta.astype(jnp.float32) + (conv_bias.astype(jnp.float32)
                                            - running_mean.astype(jnp.float32)) * scale
    else:
        scale = jnp.ones((Cout,), jnp.float32)
        shift = conv_bias.astype(jnp.float32)
    affine = jnp.stack([jnp.pad(scale, (0, Cout_p - Cout)),
                        jnp.pad(shift, (0, Cout_p - Cout))])       # (2, Cout_p) f32

    # Layout glue (plain JAX, executed once).
    x_nhwc = jnp.transpose(x_nchw, (0, 2, 3, 1)).astype(jnp.bfloat16)
    x_pad = jnp.pad(x_nhwc, ((0, 0), (P, P), (P, P), (0, 0)))
    w_hwio = jnp.transpose(weight_oihw, (2, 3, 1, 0)).astype(jnp.float32)

    vmem_limit = _vmem_limit_bytes()
    out_bytes = N * M_total * Cout_p * jnp.dtype(out_dtype).itemsize

    if Cin < LANE:
        # ----- small-Cin mode: fold (KH*KW*Cin) into one contraction axis -----
        K_full = KH * KW * Cin
        K_p = _round_up(K_full, LANE)
        taps = []
        for kh in range(KH):
            for kw in range(KW):
                taps.append(x_pad[:, kh:kh + (Ho - 1) * SH + 1:SH,
                                  kw:kw + (Wo - 1) * SW + 1:SW, :])
        x_col = jnp.concatenate(taps, axis=-1)                  # (N, Ho, Wo, K_full)
        x_col = jnp.pad(x_col, ((0, 0), (0, 0), (0, 0), (0, K_p - K_full)))
        x_col = x_col.reshape(N, M_total, K_p)

        w_col = w_hwio.reshape(K_full, Cout)                    # (kh, kw, c) order
        w_col = jnp.pad(w_col, ((0, K_p - K_full), (0, Cout_p - Cout)))
        w_col = w_col.astype(jnp.bfloat16)

        TILE_M = _pick_tile_m(M_total)
        n_m = M_total // TILE_M

        flops = 2 * N * M_total * K_p * Cout_p
        bytes_accessed = x_col.size * 2 + w_col.size * 2 + out_bytes

        kernel = functools.partial(_gemm_bn_relu_kernel, has_relu=has_relu)
        out_flat = pl.pallas_call(
            kernel,
            out_shape=jax.ShapeDtypeStruct((N, M_total, Cout_p), out_dtype),
            grid=(N, n_co, n_m),   # row-tile innermost -> weight tile stays resident
            in_specs=[
                pl.BlockSpec((None, TILE_M, K_p), lambda n, ci, mi: (n, mi, 0)),
                pl.BlockSpec((K_p, TILE_CO), lambda n, ci, mi: (0, ci)),
                pl.BlockSpec((2, TILE_CO), lambda n, ci, mi: (0, ci)),
            ],
            out_specs=pl.BlockSpec((None, TILE_M, TILE_CO),
                                   lambda n, ci, mi: (n, mi, ci)),
            compiler_params=pltpu.CompilerParams(
                dimension_semantics=("parallel", "parallel", "arbitrary"),
                vmem_limit_bytes=vmem_limit),
            cost_estimate=pl.CostEstimate(flops=flops, transcendentals=0,
                                          bytes_accessed=bytes_accessed),
        )(x_col, w_col, affine)
    else:
        # ----- direct mode: per-tap shifted GEMMs over the padded image -----
        Cin_p = _round_up(Cin, LANE)
        x_padc = jnp.pad(x_pad, ((0, 0), (0, 0), (0, 0), (0, Cin_p - Cin)))
        w_pad = jnp.pad(w_hwio, ((0, 0), (0, 0),
                                 (0, Cin_p - Cin), (0, Cout_p - Cout)))
        w_pad = w_pad.astype(jnp.bfloat16)

        # Largest row tile dividing Ho with a sublane-aligned (tile_ho*Wo) block.
        tile_ho = Ho
        for cand in (32, 16, 8, 4, 2, 1):
            if cand <= Ho and Ho % cand == 0 and (cand * Wo) % 8 == 0:
                tile_ho = cand
                break
        n_ho = Ho // tile_ho
        TILE_M = tile_ho * Wo

        flops = 2 * N * M_total * KH * KW * Cin_p * Cout_p
        bytes_accessed = x_padc.size * 2 + w_pad.size * 2 + out_bytes

        kernel = functools.partial(_direct_conv_bn_relu_kernel,
                                   KH=KH, KW=KW, SH=SH, SW=SW,
                                   TILE_HO=tile_ho, Wo=Wo, has_relu=has_relu)
        out_flat = pl.pallas_call(
            kernel,
            out_shape=jax.ShapeDtypeStruct((N, M_total, Cout_p), out_dtype),
            grid=(N, n_co, n_ho),  # row-tile innermost -> weight tile stays resident
            in_specs=[
                pl.BlockSpec((None, Hp, Wp, Cin_p), lambda n, ci, hi: (n, 0, 0, 0)),
                pl.BlockSpec((KH, KW, Cin_p, TILE_CO),
                             lambda n, ci, hi: (0, 0, 0, ci)),
                pl.BlockSpec((2, TILE_CO), lambda n, ci, hi: (0, ci)),
            ],
            out_specs=pl.BlockSpec((None, TILE_M, TILE_CO),
                                   lambda n, ci, hi: (n, hi, ci)),
            scratch_shapes=[pltpu.VMEM((TILE_M, TILE_CO), jnp.float32)],
            compiler_params=pltpu.CompilerParams(
                # Only N "parallel": megacore-splitting hi/ci would duplicate the
                # whole-image x block in both cores' VMEM (v7x footprint concern).
                dimension_semantics=("parallel", "arbitrary", "arbitrary"),
                vmem_limit_bytes=vmem_limit),
            cost_estimate=pl.CostEstimate(flops=flops, transcendentals=0,
                                          bytes_accessed=bytes_accessed),
        )(x_padc, w_pad, affine)

    # Drop channel padding, unflatten spatial, back to NCHW.
    out = out_flat[:, :, :Cout].reshape(N, Ho, Wo, Cout)
    return jnp.transpose(out, (0, 3, 1, 2))


# --------------------------------------------------------------------------
# Pure-JAX reference (for the correctness assert)
# --------------------------------------------------------------------------
def _reference(x_nchw, weight_oihw, conv_bias, gamma, beta, mean, var,
               *, stride, padding, has_bn, has_relu, eps=1e-5):
    y = lax.conv_general_dilated(
        x_nchw, weight_oihw, (stride, stride),
        [(padding, padding), (padding, padding)],
        dimension_numbers=("NCHW", "OIHW", "NCHW"))
    y = y + conv_bias[None, :, None, None]
    if has_bn:
        y = (y - mean[None, :, None, None]) / jnp.sqrt(var + eps)[None, :, None, None]
        y = y * gamma[None, :, None, None] + beta[None, :, None, None]
    if has_relu:
        y = jnp.maximum(y, 0.0)
    return y


if __name__ == "__main__":
    # Module config: conv_bn_relu(in_planes=4, out_planes=8, kernel_size=3,
    #                             stride=1, padding=1, has_bn=True, has_relu=True)
    N, Cin, H, W = 2, 4, 16, 16
    Cout, K, stride, padding = 8, 3, 1, 1

    key = jax.random.PRNGKey(0)
    kx, kw, kb, kg, kbe, km, kv = jax.random.split(key, 7)
    x = jax.random.normal(kx, (N, Cin, H, W), jnp.float32)
    weight = 0.1 * jax.random.normal(kw, (Cout, Cin, K, K), jnp.float32)
    conv_bias = 0.1 * jax.random.normal(kb, (Cout,), jnp.float32)
    gamma = 1.0 + 0.1 * jax.random.normal(kg, (Cout,), jnp.float32)
    beta = 0.1 * jax.random.normal(kbe, (Cout,), jnp.float32)
    running_mean = 0.1 * jax.random.normal(km, (Cout,), jnp.float32)
    running_var = 0.5 + jnp.abs(jax.random.normal(kv, (Cout,), jnp.float32))

    out = conv_bn_relu_forward(x, weight, conv_bias, gamma, beta,
                               running_mean, running_var,
                               stride=stride, padding=padding,
                               has_bn=True, has_relu=True)
    out = jax.block_until_ready(out)

    ref = _reference(x, weight, conv_bias, gamma, beta, running_mean, running_var,
                     stride=stride, padding=padding, has_bn=True, has_relu=True)
    assert out.shape == (N, Cout, H, W), out.shape
    # bf16 matmul operands with f32 accumulation -> loosened tolerance.
    assert jnp.allclose(out, ref, atol=3e-2, rtol=3e-2), \
        f"max abs err = {jnp.max(jnp.abs(out - ref))}"

    print("KERNEL_OK")
</pallas_src>

<mosaic_0001>
module attributes {stable_mosaic.version = 11 : i64} {
  func.func @_gemm_bn_relu_kernel(%arg0: i32, %arg1: i32, %arg2: i32, %arg3: memref<1x256x128xbf16, #tpu.memory_space<vmem>>, %arg4: memref<128x128xbf16, #tpu.memory_space<vmem>>, %arg5: memref<2x128xf32, #tpu.memory_space<vmem>>, %arg6: memref<1x256x128xf32, #tpu.memory_space<vmem>>) attributes {dimension_semantics = [#tpu.dimension_semantics<parallel>, #tpu.dimension_semantics<parallel>, #tpu.dimension_semantics<arbitrary>], iteration_bounds = array<i64: 2, 1, 1>, scalar_prefetch = 0 : i64, scratch_operands = 0 : i64, tpu.core_type = #tpu.core_type<tc>, window_params = [{transform_indices = @transform_0, window_bounds = array<i64: 1, 256, 128>}, {transform_indices = @transform_1, window_bounds = array<i64: 128, 128>}, {transform_indices = @transform_2, window_bounds = array<i64: 2, 128>}, {transform_indices = @transform_3, window_bounds = array<i64: 1, 256, 128>}]} {
    %c0 = arith.constant 0 : index
    %c0_0 = arith.constant 0 : index
    %c0_1 = arith.constant 0 : index
    %0 = vector.load %arg3[%c0, %c0_0, %c0_1] : memref<1x256x128xbf16, #tpu.memory_space<vmem>>, vector<1x256x128xbf16>
    %1 = vector.shape_cast %0 : vector<1x256x128xbf16> to vector<256x128xbf16>
    %c0_2 = arith.constant 0 : index
    %c0_3 = arith.constant 0 : index
    %2 = vector.load %arg4[%c0_2, %c0_3] : memref<128x128xbf16, #tpu.memory_space<vmem>>, vector<128x128xbf16>
    %cst = arith.constant dense<0.000000e+00> : vector<256x128xf32>
    %3 = tpu.matmul %1, %2, %cst {dimension_numbers = #tpu.dot_dimension_numbers<[1], [0], [0], [1], [0, 0, 1, 1], [], []>} : vector<256x128xbf16>, vector<128x128xbf16>, vector<256x128xf32> -> vector<256x128xf32>
    %c0_4 = arith.constant 0 : index
    %c0_5 = arith.constant 0 : index
    %4 = vector.load %arg5[%c0_4, %c0_5] : memref<2x128xf32, #tpu.memory_space<vmem>>, vector<1x128xf32>
    %5 = vector.broadcast %4 : vector<1x128xf32> to vector<256x128xf32>
    %6 = arith.mulf %3, %5 : vector<256x128xf32>
    %c1 = arith.constant 1 : index
    %c0_6 = arith.constant 0 : index
    %7 = vector.load %arg5[%c1, %c0_6] : memref<2x128xf32, #tpu.memory_space<vmem>>, vector<1x128xf32>
    %8 = vector.broadcast %7 : vector<1x128xf32> to vector<256x128xf32>
    %9 = arith.addf %6, %8 : vector<256x128xf32>
    %cst_7 = arith.constant 0.000000e+00 : f32
    %10 = vector.broadcast %cst_7 : f32 to vector<256x128xf32>
    %11 = arith.maximumf %9, %10 : vector<256x128xf32>
    %c0_8 = arith.constant 0 : index
    %c0_9 = arith.constant 0 : index
    %c0_10 = arith.constant 0 : index
    %12 = vector.load %arg6[%c0_8, %c0_9, %c0_10] : memref<1x256x128xf32, #tpu.memory_space<vmem>>, vector<1x256x128xf32>
    %13 = vector.shape_cast %12 : vector<1x256x128xf32> to vector<256x128xf32>
    %14 = vector.shape_cast %11 : vector<256x128xf32> to vector<1x256x128xf32>
    tpu.vector_store %arg6[%c0_8, %c0_9, %c0_10], %14 {strides = array<i32>} : memref<1x256x128xf32, #tpu.memory_space<vmem>>, vector<1x256x128xf32>,
    return
  }
  func.func @transform_0(%arg0: i32, %arg1: i32, %arg2: i32) -> (i32, i32, i32) {
    %c0_i32 = arith.constant 0 : i32
    %c0_i32_0 = arith.constant 0 : i32
    return %arg0, %arg2, %c0_i32 : i32, i32, i32
  }
  func.func @transform_1(%arg0: i32, %arg1: i32, %arg2: i32) -> (i32, i32) {
    %c0_i32 = arith.constant 0 : i32
    %c0_i32_0 = arith.constant 0 : i32
    return %c0_i32, %arg1 : i32, i32
  }
  func.func @transform_2(%arg0: i32, %arg1: i32, %arg2: i32) -> (i32, i32) {
    %c0_i32 = arith.constant 0 : i32
    %c0_i32_0 = arith.constant 0 : i32
    return %c0_i32, %arg1 : i32, i32
  }
  func.func @transform_3(%arg0: i32, %arg1: i32, %arg2: i32) -> (i32, i32, i32) {
    %c0_i32 = arith.constant 0 : i32
    return %arg0, %arg2, %arg1 : i32, i32, i32
  }
}

</mosaic_0001>

<llo_original>
// kernel: tpu_custom_call.1
$region0: #{tpu_custom_call.1}
  #allocation0 [shape = 'u32[]', space=smem, size = 0x4, offset = 0x4, fixed_abs, tag = 'smem constant byte address 0x4 - core index']
  #allocation1 [shape = 'u32[144,128]{1,0:T(1,128)}', space=vmem, size = 0x12000, scoped, tag = 'internal scratch']
  %s0 = inlined_call_operand.hbm [shape: bf16[2,256,128], index: 0, kind: input, shape index: {}]
  %s1 = inlined_call_operand.hbm [shape: bf16[128,128], index: 1, kind: input, shape index: {}]
  %s2 = inlined_call_operand.vmem [shape: f32[2,128], index: 2, kind: input, shape index: {}]
  %s3 = inlined_call_operand.hbm [shape: f32[2,256,128], index: 3, kind: output, shape index: {}]
  %s4 = sld [smem:[#allocation0]]
  $region53: #{tpu_custom_call.1} parent=0
    _
  %s6 = ssub.s32 1, %s4
  %s7 = scalar_select 0, %s6, %s4
  $region1: #{tpu_custom_call.1} parent=0
    #allocation2 [shape = 'u8[131072]{0}', space=vmem, size = 0x20000, scoped, tag = 'input window, operand 0']
    #allocation3 [shape = 's32[2]{0}', space=sflag, size = 0x8, scoped, tag = 'scoped memory for tpu_custom_call.1']
    #allocation4 [shape = 's32[2]{0}', space=sflag, size = 0x8, scoped, tag = 'scoped memory for tpu_custom_call.1']
    #allocation5 [shape = 'u8[32768]{0}', space=vmem, size = 0x8000, scoped, tag = 'input window, operand 1, single buffered']
    #allocation6 [shape = 's32[1]{0}', space=sflag, size = 0x4, scoped, tag = 'scoped memory for tpu_custom_call.1']
    #allocation7 [shape = 'u8[262144]{0}', space=vmem, size = 0x40000, scoped, tag = 'output window, operand 0']
    %8 = vsyncpa [#allocation3], 0
    %s9 = scalar_lea.sflag [#allocation3], 1
    %10 = vsyncpa %s9, 0
    %11 = vsyncpa [#allocation6], 0
    %12 = vsyncpa [#allocation4], 0
    %s13 = scalar_lea.sflag [#allocation4], 1
    %14 = vsyncpa %s13, 0
    loop: start=0, step=1, limit=4
    $region2: #{tpu_custom_call.1} parent=1 // loop_pre_header
      _
    $region3: #{tpu_custom_call.1} parent=1 // loop_header
      %s16 = sphi 0, %s20
      %p17 = scmp.ge.s32.totalorder %s16, 4
      %s23 = sphi 0, %s42
      %s24 = sphi 0, %s38
      %s25 = sphi 0, %s34
      %s26 = sphi 0, %s23
      %s27 = sphi 0, %s24
      %s28 = sphi 0, %s25
      %s29 = sphi 0, %s26
      %s30 = sphi 0, %s27
      %s31 = sphi 0, %s28
      %s47 = sphi 0, %s49
      %s50 = sphi 0, %s47
      %s51 = sphi 0, %s50
      %s67 = sphi 0, %s51
      %s73 = sphi 0, %s75
      %s76 = sphi 0, %s73
      %s77 = sphi 0, %s76
      %s93 = sphi 0, %s77
      %s99 = sphi 0, %s101
      %s102 = sphi 0, %s99
      %s103 = sphi 0, %s102
      %s119 = sphi 0, %s103
      %s129 = sphi 0, %s131
      %s132 = sphi 0, %s129
      %s133 = sphi 0, %s132
      %s149 = sphi 0, %s133
    $region4: #{tpu_custom_call.1} parent=1 // loop_header_branch
      %19 = sbr.rel (%p17) target = $region8
    $region5: #{tpu_custom_call.1} parent=1 // loop_body
      %s21 = ssub.s32 %s16, 1
      %s22 = ssub.s32 %s16, 2
      %s32 = sadd.s32 1, %s25
      %p33 = scmp.ge.s32.totalorder %s32, 1
      %s34 = scalar_select %p33, 0, %s32
      %s35 = sadd.s32 1, %s24
      %s36 = scalar_select %p33, %s35, %s24
      %p37 = scmp.ge.s32.totalorder %s36, 1
      %s38 = scalar_select %p37, 0, %s36
      %s39 = sadd.s32 1, %s23
      %s40 = scalar_select %p37, %s39, %s23
      %p41 = scmp.ge.s32.totalorder %s40, 2
      %s42 = scalar_select %p41, 0, %s40
      %s43 = ssub.s32 %s23, %s42
      %s44 = ssub.s32 %s25, %s34
      %s45 = sor.u32 %s43, %s44
      %p46 = scmp.eq.s32.totalorder %s45, 0
      %s48 = sadd.s32 %s47, 1
      %s49 = scalar_select %p46, %s47, %s48
      %p52 = pneg %p46
      %p53 = scmp.eq.s32.totalorder %s16, 1
      %p54 = por %p52, %p53
      %p55 = scmp.ne.s32.totalorder %s47, %s50
      %p56 = scmp.eq.s32.totalorder %s16, 0
      %p57 = por %p55, %p56
      %p58 = scmp.ne.s32.totalorder %s47, %s50
      %p59 = scmp.eq.s32.totalorder %s21, 1
      %p60 = por %p58, %p59
      %p61 = scmp.ne.s32.totalorder %s50, %s51
      %p62 = scmp.eq.s32.totalorder %s21, 0
      %p63 = por %p61, %p62
      %p64 = scmp.ne.s32.totalorder %s50, %s51
      %p65 = scmp.eq.s32.totalorder %s22, 1
      %p66 = por %p64, %p65
      %p68 = scmp.ne.s32.totalorder %s51, %s67
      %p69 = scmp.eq.s32.totalorder %s22, 0
      %p70 = por %p68, %p69
      %s71 = ssub.s32 %s24, %s38
      %p72 = scmp.eq.s32.totalorder %s71, 0
      %s74 = sadd.s32 %s73, 1
      %s75 = scalar_select %p72, %s73, %s74
      %p78 = pneg %p72
      %p79 = scmp.eq.s32.totalorder %s16, 1
      %p80 = por %p78, %p79
      %p81 = scmp.ne.s32.totalorder %s73, %s76
      %p82 = scmp.eq.s32.totalorder %s16, 0
      %p83 = por %p81, %p82
      %p84 = scmp.ne.s32.totalorder %s73, %s76
      %p85 = scmp.eq.s32.totalorder %s21, 1
      %p86 = por %p84, %p85
      %p87 = scmp.ne.s32.totalorder %s76, %s77
      %p88 = scmp.eq.s32.totalorder %s21, 0
      %p89 = por %p87, %p88
      %p90 = scmp.ne.s32.totalorder %s76, %s77
      %p91 = scmp.eq.s32.totalorder %s22, 1
      %p92 = por %p90, %p91
      %p94 = scmp.ne.s32.totalorder %s77, %s93
      %p95 = scmp.eq.s32.totalorder %s22, 0
      %p96 = por %p94, %p95
      %s97 = ssub.s32 %s24, %s38
      %p98 = scmp.eq.s32.totalorder %s97, 0
      %s100 = sadd.s32 %s99, 1
      %s101 = scalar_select %p98, %s99, %s100
      %p104 = pneg %p98
      %p105 = scmp.eq.s32.totalorder %s16, 1
      %p106 = por %p104, %p105
      %p107 = scmp.ne.s32.totalorder %s99, %s102
      %p108 = scmp.eq.s32.totalorder %s16, 0
      %p109 = por %p107, %p108
      %p110 = scmp.ne.s32.totalorder %s99, %s102
      %p111 = scmp.eq.s32.totalorder %s21, 1
      %p112 = por %p110, %p111
      %p113 = scmp.ne.s32.totalorder %s102, %s103
      %p114 = scmp.eq.s32.totalorder %s21, 0
      %p115 = por %p113, %p114
      %p116 = scmp.ne.s32.totalorder %s102, %s103
      %p117 = scmp.eq.s32.totalorder %s22, 1
      %p118 = por %p116, %p117
      %p120 = scmp.ne.s32.totalorder %s103, %s119
      %p121 = scmp.eq.s32.totalorder %s22, 0
      %p122 = por %p120, %p121
      %s123 = ssub.s32 %s23, %s42
      %s124 = ssub.s32 %s25, %s34
      %s125 = sor.u32 %s123, %s124
      %s126 = ssub.s32 %s24, %s38
      %s127 = sor.u32 %s125, %s126
      %p128 = scmp.eq.s32.totalorder %s127, 0
      %s130 = sadd.s32 %s129, 1
      %s131 = scalar_select %p128, %s129, %s130
      %p134 = pneg %p128
      %p135 = scmp.eq.s32.totalorder %s16, 1
      %p136 = por %p134, %p135
      %p137 = scmp.ne.s32.totalorder %s129, %s132
      %p138 = scmp.eq.s32.totalorder %s16, 0
      %p139 = por %p137, %p138
      %p140 = scmp.ne.s32.totalorder %s129, %s132
      %p141 = scmp.eq.s32.totalorder %s21, 1
      %p142 = por %p140, %p141
      %p143 = scmp.ne.s32.totalorder %s132, %s133
      %p144 = scmp.eq.s32.totalorder %s21, 0
      %p145 = por %p143, %p144
      %p146 = scmp.ne.s32.totalorder %s132, %s133
      %p147 = scmp.eq.s32.totalorder %s22, 1
      %p148 = por %p146, %p147
      %p150 = scmp.ne.s32.totalorder %s133, %s149
      %p151 = scmp.eq.s32.totalorder %s22, 0
      %p152 = por %p150, %p151
      %p153 = scmp.le.s32.totalorder 1, %s16
      %p154 = scmp.lt.s32.totalorder %s16, 3
      %p155 = pnand %p153, %p154
      %p156 = pneg %p155
      // Predicated region
      $region9: #{tpu_custom_call.1} parent=5 // pred_check
        _
      $region10: #{tpu_custom_call.1} parent=5 // pred_check_branch
        %158 = sbr.rel (%p155) target = $region12
      $region11: #{tpu_custom_call.1} parent=5 // pred_region
        %s159 = ssub.s32 %s16, 1
        // Predicated region
        $region13: #{tpu_custom_call.1} parent=11 // pred_check
          %p160 = pneg %p89
        $region14: #{tpu_custom_call.1} parent=11 // pred_check_branch
          %162 = sbr.rel (%p160) target = $region16
        $region15: #{tpu_custom_call.1} parent=11 // pred_region
          %s164 = ssub.s32 1024, 1024
          %165 = vsyncadd [#allocation6], %s164
          %s166 = smul.addr %s27, 64
          %s167 = scalar_lea.hbm %s1, %s166
          %s168 = sshll.u32 [#allocation5], 4
          %s169 = int_to_ptr.vmem [resolvable:$true] %s168
          %174 = dma.hbm_to_vmem [thread:$0]  %s167, 1024, %s169, [#allocation6], 64, 64, 4
        $region16: #{tpu_custom_call.1} parent=11 // pred_fallthru
          _
        // Predicated region
        $region17: #{tpu_custom_call.1} parent=11 // pred_check
          %p175 = pneg %p115
        $region18: #{tpu_custom_call.1} parent=11 // pred_check_branch
          %177 = sbr.rel (%p175) target = $region20
        $region19: #{tpu_custom_call.1} parent=11 // pred_region
          %p178 = scmp.lt.s32.totalorder %s27, 0
          %s179 = scalar_select %p178, %s27, 0
          %s180 = smul.addr %s179, 2
          %s181 = scalar_lea.vmem %s2, %s180
        $region20: #{tpu_custom_call.1} parent=11 // pred_fallthru
          _
      $region12: #{tpu_custom_call.1} parent=5 // pred_fallthru
        _
      %p182 = scmp.lt.s32.totalorder %s16, 2
      // Predicated region
      $region21: #{tpu_custom_call.1} parent=5 // pred_check
        %p183 = pneg %p182
      $region22: #{tpu_custom_call.1} parent=5 // pred_check_branch
        %185 = sbr.rel (%p183) target = $region24
      $region23: #{tpu_custom_call.1} parent=5 // pred_region
        // Predicated region
        $region25: #{tpu_custom_call.1} parent=23 // pred_check
          %p186 = pneg %p57
        $region26: #{tpu_custom_call.1} parent=23 // pred_check_branch
          %188 = sbr.rel (%p186) target = $region28
        $region27: #{tpu_custom_call.1} parent=23 // pred_region
          %s189 = sand.u32 %s47, 1
          %s190 = scalar_lea.sflag [#allocation3], %s189
          %s191 = sand.u32 %s47, 1
          %s192 = smul.addr %s191, 128
          %s193 = scalar_lea.vmem [#allocation2], %s192
          %s194 = smul.u32 32, %s25
          %s196 = ssub.s32 2048, 2048
          %197 = vsyncadd %s190, %s196
          %s198 = smul.addr %s23, 32
          %s199 = sadd.s32 %s194, %s198
          %s200 = smul.addr %s199, 64
          %s201 = scalar_lea.hbm %s0, %s200
          %s202 = sshll.u32 %s193, 4
          %s203 = int_to_ptr.vmem [resolvable:$true] %s202
          %208 = dma.hbm_to_vmem [thread:$0]  %s201, 2048, %s203, %s190, 64, 64, 4
        $region28: #{tpu_custom_call.1} parent=23 // pred_fallthru
          _
      $region24: #{tpu_custom_call.1} parent=5 // pred_fallthru
        _
      %p209 = scmp.le.s32.totalorder 1, %s16
      %p210 = scmp.lt.s32.totalorder %s16, 3
      %p211 = pnand %p209, %p210
      %p212 = pneg %p211
      // Predicated region
      $region29: #{tpu_custom_call.1} parent=5 // pred_check
        _
      $region30: #{tpu_custom_call.1} parent=5 // pred_check_branch
        %214 = sbr.rel (%p211) target = $region32
      $region31: #{tpu_custom_call.1} parent=5 // pred_region
        %s215 = ssub.s32 %s16, 1
        %s216 = sand.u32 %s50, 1
        %s217 = scalar_lea.sflag [#allocation3], %s216
        %s218 = sand.u32 %s50, 1
        %s219 = smul.addr %s218, 128
        %s220 = scalar_lea.vmem [#allocation2], %s219
        // Predicated region
        $region33: #{tpu_custom_call.1} parent=31 // pred_check
          %p221 = pneg %p63
        $region34: #{tpu_custom_call.1} parent=31 // pred_check_branch
          %223 = sbr.rel (%p221) target = $region36
        $region35: #{tpu_custom_call.1} parent=31 // pred_region
          %224 = dma.done %s217, 2048
        $region36: #{tpu_custom_call.1} parent=31 // pred_fallthru
          _
        // Predicated region
        $region37: #{tpu_custom_call.1} parent=31 // pred_check
          %p225 = pneg %p89
        $region38: #{tpu_custom_call.1} parent=31 // pred_check_branch
          %227 = sbr.rel (%p225) target = $region40
        $region39: #{tpu_custom_call.1} parent=31 // pred_region
          %228 = dma.done [#allocation6], 1024
        $region40: #{tpu_custom_call.1} parent=31 // pred_fallthru
          _
        %s229 = sand.u32 %s50, 1
        %s230 = scalar_lea.sflag [#allocation3], %s229
        %s231 = sand.u32 %s50, 1
        %s232 = smul.addr %s231, 128
        %s233 = scalar_lea.vmem [#allocation2], %s232
        %p234 = pneg %p63
        %p235 = pneg %p60
        %p236 = pneg %p89
        %p237 = pneg %p86
        %p238 = scmp.lt.s32.totalorder %s27, 0
        %s239 = scalar_select %p238, %s27, 0
        %s240 = smul.addr %s239, 2
        %s241 = scalar_lea.vmem %s2, %s240
        %p242 = pneg %p115
        %p243 = pneg %p112
        %p244 = pneg %p145
        %p245 = pneg %p142
        %s246 = sand.u32 %s132, 1
        %s247 = scalar_lea.sflag [#allocation4], %s246
        %s248 = sand.u32 %s132, 1
        %s249 = smul.addr %s248, 256
        %s250 = scalar_lea.vmem [#allocation7], %s249
        %s251 = smul.u32 32, %s28
        %p252 = scmp.lt.s32.totalorder %s27, 0
        %s253 = scalar_select %p252, %s27, 0
        %s254 = smul.addr %s253, 2
        %s255 = scalar_lea.vmem %s2, %s254
        %s256 = smul.u32 32, %s28
        %v258 = vld [vmem:[%s220] sm:$0xf]
        %v259 = vld [vmem:[%s220 + $0x4] sm:$0xf]
        %v260 = vld [vmem:[%s220 + $0x8] sm:$0xf]
        %v261 = vld [vmem:[%s220 + $0xc] sm:$0xf]
        %v262 = vld [vmem:[%s220 + $0x10] sm:$0xf]
        %v263 = vld [vmem:[%s220 + $0x14] sm:$0xf]
        %v264 = vld [vmem:[%s220 + $0x18] sm:$0xf]
        %v265 = vld [vmem:[%s220 + $0x1c] sm:$0xf]
        %v266 = vld [vmem:[%s220 + $0x20] sm:$0xf]
        %v267 = vld [vmem:[%s220 + $0x24] sm:$0xf]
        %v268 = vld [vmem:[%s220 + $0x28] sm:$0xf]
        %v269 = vld [vmem:[%s220 + $0x2c] sm:$0xf]
        %v270 = vld [vmem:[%s220 + $0x30] sm:$0xf]
        %v271 = vld [vmem:[%s220 + $0x34] sm:$0xf]
        %v272 = vld [vmem:[%s220 + $0x38] sm:$0xf]
        %v273 = vld [vmem:[%s220 + $0x3c] sm:$0xf]
        %v274 = vld [vmem:[%s220 + $0x40] sm:$0xf]
        %v275 = vld [vmem:[%s220 + $0x44] sm:$0xf]
        %v276 = vld [vmem:[%s220 + $0x48] sm:$0xf]
        %v277 = vld [vmem:[%s220 + $0x4c] sm:$0xf]
        %v278 = vld [vmem:[%s220 + $0x50] sm:$0xf]
        %v279 = vld [vmem:[%s220 + $0x54] sm:$0xf]
        %v280 = vld [vmem:[%s220 + $0x58] sm:$0xf]
        %v281 = vld [vmem:[%s220 + $0x5c] sm:$0xf]
        %v282 = vld [vmem:[%s220 + $0x60] sm:$0xf]
        %v283 = vld [vmem:[%s220 + $0x64] sm:$0xf]
        %v284 = vld [vmem:[%s220 + $0x68] sm:$0xf]
        %v285 = vld [vmem:[%s220 + $0x6c] sm:$0xf]
        %v286 = vld [vmem:[%s220 + $0x70] sm:$0xf]
        %v287 = vld [vmem:[%s220 + $0x74] sm:$0xf]
        %v288 = vld [vmem:[%s220 + $0x78] sm:$0xf]
        %v289 = vld [vmem:[%s220 + $0x7c] sm:$0xf]
        %v290 = vld [vmem:[#allocation5] sm:$0xf]
        %v291 = vld [vmem:[#allocation5 + $0x4] sm:$0xf]
        %v292 = vld [vmem:[#allocation5 + $0x8] sm:$0xf]
        %v293 = vld [vmem:[#allocation5 + $0xc] sm:$0xf]
        %v294 = vld [vmem:[#allocation5 + $0x10] sm:$0xf]
        %v295 = vld [vmem:[#allocation5 + $0x14] sm:$0xf]
        %v296 = vld [vmem:[#allocation5 + $0x18] sm:$0xf]
        %v297 = vld [vmem:[#allocation5 + $0x1c] sm:$0xf]
        %v298 = vld [vmem:[#allocation5 + $0x20] sm:$0xf]
        %v299 = vld [vmem:[#allocation5 + $0x24] sm:$0xf]
        %v300 = vld [vmem:[#allocation5 + $0x28] sm:$0xf]
        %v301 = vld [vmem:[#allocation5 + $0x2c] sm:$0xf]
        %v302 = vld [vmem:[#allocation5 + $0x30] sm:$0xf]
        %v303 = vld [vmem:[#allocation5 + $0x34] sm:$0xf]
        %v304 = vld [vmem:[#allocation5 + $0x38] sm:$0xf]
        %v305 = vld [vmem:[#allocation5 + $0x3c] sm:$0xf]
        %v338 = vunpack.c.l.b16 %v258
        %v339 = vunpack.c.l.b16 %v259
        %v340 = vunpack.c.l.b16 %v260
        %v341 = vunpack.c.l.b16 %v261
        %v342 = vunpack.c.l.b16 %v262
        %v343 = vunpack.c.l.b16 %v263
        %v344 = vunpack.c.l.b16 %v264
        %v345 = vunpack.c.l.b16 %v265
        %v346 = vunpack.c.l.b16 %v266
        %v347 = vunpack.c.l.b16 %v267
        %v348 = vunpack.c.l.b16 %v268
        %v349 = vunpack.c.l.b16 %v269
        %v350 = vunpack.c.l.b16 %v270
        %v351 = vunpack.c.l.b16 %v271
        %v352 = vunpack.c.l.b16 %v272
        %v353 = vunpack.c.l.b16 %v273
        %v354 = vunpack.c.l.b16 %v274
        %v355 = vunpack.c.l.b16 %v275
        %v356 = vunpack.c.l.b16 %v276
        %v357 = vunpack.c.l.b16 %v277
        %v358 = vunpack.c.l.b16 %v278
        %v359 = vunpack.c.l.b16 %v279
        %v360 = vunpack.c.l.b16 %v280
        %v361 = vunpack.c.l.b16 %v281
        %v362 = vunpack.c.l.b16 %v282
        %v363 = vunpack.c.l.b16 %v283
        %v364 = vunpack.c.l.b16 %v284
        %v365 = vunpack.c.l.b16 %v285
        %v366 = vunpack.c.l.b16 %v286
        %v367 = vunpack.c.l.b16 %v287
        %v368 = vunpack.c.l.b16 %v288
        %v369 = vunpack.c.l.b16 %v289
        %v370 = vpack.c.b16 %v339, %v338
        %v371 = vpack.c.b16 %v341, %v340
        %v372 = vpack.c.b16 %v343, %v342
        %v373 = vpack.c.b16 %v345, %v344
        %v374 = vpack.c.b16 %v347, %v346
        %v375 = vpack.c.b16 %v349, %v348
        %v376 = vpack.c.b16 %v351, %v350
        %v377 = vpack.c.b16 %v353, %v352
        %v378 = vpack.c.b16 %v355, %v354
        %v379 = vpack.c.b16 %v357, %v356
        %v380 = vpack.c.b16 %v359, %v358
        %v381 = vpack.c.b16 %v361, %v360
        %v382 = vpack.c.b16 %v363, %v362
        %v383 = vpack.c.b16 %v365, %v364
        %v384 = vpack.c.b16 %v367, %v366
        %v385 = vpack.c.b16 %v369, %v368
        %v418 = vunpack.c.l.b16 %v290
        %v419 = vunpack.c.l.b16 %v291
        %v420 = vunpack.c.l.b16 %v292
        %v421 = vunpack.c.l.b16 %v293
        %v422 = vunpack.c.l.b16 %v294
        %v423 = vunpack.c.l.b16 %v295
        %v424 = vunpack.c.l.b16 %v296
        %v425 = vunpack.c.l.b16 %v297
        %v426 = vunpack.c.l.b16 %v298
        %v427 = vunpack.c.l.b16 %v299
        %v428 = vunpack.c.l.b16 %v300
        %v429 = vunpack.c.l.b16 %v301
        %v430 = vunpack.c.l.b16 %v302
        %v431 = vunpack.c.l.b16 %v303
        %v432 = vunpack.c.l.b16 %v304
        %v433 = vunpack.c.l.b16 %v305
        %v434 = vpack.c.b16 %v419, %v418
        %v435 = vpack.c.b16 %v421, %v420
        %v436 = vpack.c.b16 %v423, %v422
        %v437 = vpack.c.b16 %v425, %v424
        %v438 = vpack.c.b16 %v427, %v426
        %v439 = vpack.c.b16 %v429, %v428
        %v440 = vpack.c.b16 %v431, %v430
        %v441 = vpack.c.b16 %v433, %v432
        %450 = vmatprep.subr.bf16.mxu0 0
        %451 = vmatpush1.bf16.msra.mxu0 %v441
        %452 = vmatprep.subr.bf16.mxu0 0
        %453 = vmatpush1.bf16.msra.mxu0 %v440
        %454 = vmatprep.subr.bf16.mxu0 0
        %455 = vmatpush1.bf16.msra.mxu0 %v439
        %456 = vmatprep.subr.bf16.mxu0 0
        %457 = vmatpush1.bf16.msra.mxu0 %v438
        %458 = vmatprep.subr.bf16.mxu0 0
        %459 = vmatpush1.bf16.msra.mxu0 %v437
        %460 = vmatprep.subr.bf16.mxu0 0
        %461 = vmatpush1.bf16.msra.mxu0 %v436
        %462 = vmatprep.subr.bf16.mxu0 0
        %463 = vmatpush1.bf16.msra.mxu0 %v435
        %464 = vmatprep.subr.bf16.mxu0 0
        %465 = vmatpush1.bf16.msra.mxu0 %v434
        %466 = vmatprep.subr.bf16.mxu0 0
        %467 = vmatpush2.bf16.msra.mxu0 0
        %468 = vmatprep.subr.bf16.mxu0 0
        %469 = vmatpush2.bf16.msra.mxu0 0
        %470 = vmatprep.subr.bf16.mxu0 0
        %471 = vmatpush2.bf16.msra.mxu0 0
        %472 = vmatprep.subr.bf16.mxu0 0
        %473 = vmatpush2.bf16.msra.mxu0 0
        %474 = vmatprep.subr.bf16.mxu0 0
        %475 = vmatpush2.bf16.msra.mxu0 0
        %476 = vmatprep.subr.bf16.mxu0 0
        %477 = vmatpush2.bf16.msra.mxu0 0
        %478 = vmatprep.subr.bf16.mxu0 0
        %479 = vmatpush2.bf16.msra.mxu0 0
        %480 = vmatprep.subr.bf16.mxu0 0
        %481 = vmatpush2.bf16.msra.mxu0 0
        %482 = vmatprep.mubr.bf16.mxu0 0
        %483 = vmatmul.mubr.bf16.gmra.mxu0 %v370
        %v484 = vpop.f32.mrf.mxu0
        %v485 = vadd.f32 0.0, %v484
        %v486 = vpop.f32.mrf.mxu0
        %v487 = vpop.f32.mrf.mxu0
        %v488 = vadd.f32 0.0, %v487
        %v489 = vpop.f32.mrf.mxu0
        %490 = vmatprep.mubr.bf16.mxu0 0
        %491 = vmatmul.mubr.bf16.gmra.mxu0 %v371
        %v492 = vpop.f32.mrf.mxu0
        %v493 = vadd.f32 0.0, %v492
        %v494 = vpop.f32.mrf.mxu0
        %v495 = vpop.f32.mrf.mxu0
        %v496 = vadd.f32 0.0, %v495
        %v497 = vpop.f32.mrf.mxu0
        %498 = vmatprep.mubr.bf16.mxu0 0
        %499 = vmatmul.mubr.bf16.gmra.mxu0 %v372
        %v500 = vpop.f32.mrf.mxu0
        %v501 = vadd.f32 0.0, %v500
        %v502 = vpop.f32.mrf.mxu0
        %v503 = vpop.f32.mrf.mxu0
        %v504 = vadd.f32 0.0, %v503
        %v505 = vpop.f32.mrf.mxu0
        %506 = vmatprep.mubr.bf16.mxu0 0
        %507 = vmatmul.mubr.bf16.gmra.mxu0 %v373
        %v508 = vpop.f32.mrf.mxu0
        %v509 = vadd.f32 0.0, %v508
        %v510 = vpop.f32.mrf.mxu0
        %v511 = vpop.f32.mrf.mxu0
        %v512 = vadd.f32 0.0, %v511
        %v513 = vpop.f32.mrf.mxu0
        %514 = vmatprep.mubr.bf16.mxu0 0
        %515 = vmatmul.mubr.bf16.gmra.mxu0 %v374
        %v516 = vpop.f32.mrf.mxu0
        %v517 = vadd.f32 0.0, %v516
        %v518 = vpop.f32.mrf.mxu0
        %v519 = vpop.f32.mrf.mxu0
        %v520 = vadd.f32 0.0, %v519
        %v521 = vpop.f32.mrf.mxu0
        %522 = vmatprep.mubr.bf16.mxu0 0
        %523 = vmatmul.mubr.bf16.gmra.mxu0 %v375
        %v524 = vpop.f32.mrf.mxu0
        %v525 = vadd.f32 0.0, %v524
        %v526 = vpop.f32.mrf.mxu0
        %v527 = vpop.f32.mrf.mxu0
        %v528 = vadd.f32 0.0, %v527
        %v529 = vpop.f32.mrf.mxu0
        %530 = vmatprep.mubr.bf16.mxu0 0
        %531 = vmatmul.mubr.bf16.gmra.mxu0 %v376
        %v532 = vpop.f32.mrf.mxu0
        %v533 = vadd.f32 0.0, %v532
        %v534 = vpop.f32.mrf.mxu0
        %v535 = vpop.f32.mrf.mxu0
        %v536 = vadd.f32 0.0, %v535
        %v537 = vpop.f32.mrf.mxu0
        %538 = vmatprep.mubr.bf16.mxu0 0
        %539 = vmatmul.mubr.bf16.gmra.mxu0 %v377
        %v540 = vpop.f32.mrf.mxu0
        %v541 = vadd.f32 0.0, %v540
        %v542 = vpop.f32.mrf.mxu0
        %v543 = vpop.f32.mrf.mxu0
        %v544 = vadd.f32 0.0, %v543
        %v545 = vpop.f32.mrf.mxu0
        %546 = vmatprep.mubr.bf16.mxu0 0
        %547 = vmatmul.mubr.bf16.gmra.mxu0 %v378
        %v548 = vpop.f32.mrf.mxu0
        %v549 = vadd.f32 0.0, %v548
        %v550 = vpop.f32.mrf.mxu0
        %v551 = vpop.f32.mrf.mxu0
        %v552 = vadd.f32 0.0, %v551
        %v553 = vpop.f32.mrf.mxu0
        %554 = vmatprep.mubr.bf16.mxu0 0
        %555 = vmatmul.mubr.bf16.gmra.mxu0 %v379
        %v556 = vpop.f32.mrf.mxu0
        %v557 = vadd.f32 0.0, %v556
        %v558 = vpop.f32.mrf.mxu0
        %v559 = vpop.f32.mrf.mxu0
        %v560 = vadd.f32 0.0, %v559
        %v561 = vpop.f32.mrf.mxu0
        %562 = vmatprep.mubr.bf16.mxu0 0
        %563 = vmatmul.mubr.bf16.gmra.mxu0 %v380
        %v564 = vpop.f32.mrf.mxu0
        %v565 = vadd.f32 0.0, %v564
        %v566 = vpop.f32.mrf.mxu0
        %v567 = vpop.f32.mrf.mxu0
        %v568 = vadd.f32 0.0, %v567
        %v569 = vpop.f32.mrf.mxu0
        %570 = vmatprep.mubr.bf16.mxu0 0
        %571 = vmatmul.mubr.bf16.gmra.mxu0 %v381
        %v572 = vpop.f32.mrf.mxu0
        %v573 = vadd.f32 0.0, %v572
        %v574 = vpop.f32.mrf.mxu0
        %v575 = vpop.f32.mrf.mxu0
        %v576 = vadd.f32 0.0, %v575
        %v577 = vpop.f32.mrf.mxu0
        %578 = vmatprep.mubr.bf16.mxu0 0
        %579 = vmatmul.mubr.bf16.gmra.mxu0 %v382
        %v580 = vpop.f32.mrf.mxu0
        %v581 = vadd.f32 0.0, %v580
        %v582 = vpop.f32.mrf.mxu0
        %v583 = vpop.f32.mrf.mxu0
        %v584 = vadd.f32 0.0, %v583
        %v585 = vpop.f32.mrf.mxu0
        %586 = vmatprep.mubr.bf16.mxu0 0
        %587 = vmatmul.mubr.bf16.gmra.mxu0 %v383
        %v588 = vpop.f32.mrf.mxu0
        %v589 = vadd.f32 0.0, %v588
        %v590 = vpop.f32.mrf.mxu0
        %v591 = vpop.f32.mrf.mxu0
        %v592 = vadd.f32 0.0, %v591
        %v593 = vpop.f32.mrf.mxu0
        %594 = vmatprep.mubr.bf16.mxu0 0
        %595 = vmatmul.mubr.bf16.gmra.mxu0 %v384
        %v596 = vpop.f32.mrf.mxu0
        %v597 = vadd.f32 0.0, %v596
        %v598 = vpop.f32.mrf.mxu0
        %v599 = vpop.f32.mrf.mxu0
        %v600 = vadd.f32 0.0, %v599
        %v601 = vpop.f32.mrf.mxu0
        %602 = vmatprep.mubr.bf16.mxu0 0
        %603 = vmatmul.mubr.bf16.gmra.mxu0 %v385
        %v604 = vpop.f32.mrf.mxu0
        %v605 = vadd.f32 0.0, %v604
        %v606 = vpop.f32.mrf.mxu0
        %v607 = vpop.f32.mrf.mxu0
        %v608 = vadd.f32 0.0, %v607
        %v609 = vpop.f32.mrf.mxu0
        %610 = vdwg.mxu0
        %v611 = vld [vmem:[%s255] sm:$0x1]
        %v612 = vlaneseq
        %v613 = vshrl.u32 %v612, 7
        %v614 = vsub.s32 0, %v613
        %v615 = vrot.slane %v611, %v614
        %v616 = vmul.f32 %v485, %v615
        %v617 = vmul.f32 %v488, %v615
        %v618 = vmul.f32 %v493, %v615
        %v619 = vmul.f32 %v496, %v615
        %v620 = vmul.f32 %v501, %v615
        %v621 = vmul.f32 %v504, %v615
        %v622 = vmul.f32 %v509, %v615
        %v623 = vmul.f32 %v512, %v615
        %v624 = vmul.f32 %v517, %v615
        %v625 = vmul.f32 %v520, %v615
        %v626 = vmul.f32 %v525, %v615
        %v627 = vmul.f32 %v528, %v615
        %v628 = vmul.f32 %v533, %v615
        %v629 = vmul.f32 %v536, %v615
        %v630 = vmul.f32 %v541, %v615
        %v631 = vmul.f32 %v544, %v615
        %v632 = vmul.f32 %v549, %v615
        %v633 = vmul.f32 %v552, %v615
        %v634 = vmul.f32 %v557, %v615
        %v635 = vmul.f32 %v560, %v615
        %v636 = vmul.f32 %v565, %v615
        %v637 = vmul.f32 %v568, %v615
        %v638 = vmul.f32 %v573, %v615
        %v639 = vmul.f32 %v576, %v615
        %v640 = vmul.f32 %v581, %v615
        %v641 = vmul.f32 %v584, %v615
        %v642 = vmul.f32 %v589, %v615
        %v643 = vmul.f32 %v592, %v615
        %v644 = vmul.f32 %v597, %v615
        %v645 = vmul.f32 %v600, %v615
        %v646 = vmul.f32 %v605, %v615
        %v647 = vmul.f32 %v608, %v615
        %v648 = vld [vmem:[%s255 + $0x1] sm:$0x1]
        %v649 = vlaneseq
        %v650 = vshrl.u32 %v649, 7
        %v651 = vsub.s32 0, %v650
        %v652 = vrot.slane %v648, %v651
        %v653 = vadd.f32 %v616, %v652
        %v654 = vadd.f32 %v617, %v652
        %v655 = vadd.f32 %v618, %v652
        %v656 = vadd.f32 %v619, %v652
        %v657 = vadd.f32 %v620, %v652
        %v658 = vadd.f32 %v621, %v652
        %v659 = vadd.f32 %v622, %v652
        %v660 = vadd.f32 %v623, %v652
        %v661 = vadd.f32 %v624, %v652
        %v662 = vadd.f32 %v625, %v652
        %v663 = vadd.f32 %v626, %v652
        %v664 = vadd.f32 %v627, %v652
        %v665 = vadd.f32 %v628, %v652
        %v666 = vadd.f32 %v629, %v652
        %v667 = vadd.f32 %v630, %v652
        %v668 = vadd.f32 %v631, %v652
        %v669 = vadd.f32 %v632, %v652
        %v670 = vadd.f32 %v633, %v652
        %v671 = vadd.f32 %v634, %v652
        %v672 = vadd.f32 %v635, %v652
        %v673 = vadd.f32 %v636, %v652
        %v674 = vadd.f32 %v637, %v652
        %v675 = vadd.f32 %v638, %v652
        %v676 = vadd.f32 %v639, %v652
        %v677 = vadd.f32 %v640, %v652
        %v678 = vadd.f32 %v641, %v652
        %v679 = vadd.f32 %v642, %v652
        %v680 = vadd.f32 %v643, %v652
        %v681 = vadd.f32 %v644, %v652
        %v682 = vadd.f32 %v645, %v652
        %v683 = vadd.f32 %v646, %v652
        %v684 = vadd.f32 %v647, %v652
        %v685 = vmax.f32 %v653, 0.0
        %v686 = vmax.f32 %v654, 0.0
        %v687 = vmax.f32 %v655, 0.0
        %v688 = vmax.f32 %v656, 0.0
        %v689 = vmax.f32 %v657, 0.0
        %v690 = vmax.f32 %v658, 0.0
        %v691 = vmax.f32 %v659, 0.0
        %v692 = vmax.f32 %v660, 0.0
        %v693 = vmax.f32 %v661, 0.0
        %v694 = vmax.f32 %v662, 0.0
        %v695 = vmax.f32 %v663, 0.0
        %v696 = vmax.f32 %v664, 0.0
        %v697 = vmax.f32 %v665, 0.0
        %v698 = vmax.f32 %v666, 0.0
        %v699 = vmax.f32 %v667, 0.0
        %v700 = vmax.f32 %v668, 0.0
        %v701 = vmax.f32 %v669, 0.0
        %v702 = vmax.f32 %v670, 0.0
        %v703 = vmax.f32 %v671, 0.0
        %v704 = vmax.f32 %v672, 0.0
        %v705 = vmax.f32 %v673, 0.0
        %v706 = vmax.f32 %v674, 0.0
        %v707 = vmax.f32 %v675, 0.0
        %v708 = vmax.f32 %v676, 0.0
        %v709 = vmax.f32 %v677, 0.0
        %v710 = vmax.f32 %v678, 0.0
        %v711 = vmax.f32 %v679, 0.0
        %v712 = vmax.f32 %v680, 0.0
        %v713 = vmax.f32 %v681, 0.0
        %v714 = vmax.f32 %v682, 0.0
        %v715 = vmax.f32 %v683, 0.0
        %v716 = vmax.f32 %v684, 0.0
        %717 = vst [vmem:[%s250] sm:$0xff] %v685
        %718 = vst [vmem:[%s250 + $0x8] sm:$0xff] %v686
        %719 = vst [vmem:[%s250 + $0x10] sm:$0xff] %v687
        %720 = vst [vmem:[%s250 + $0x18] sm:$0xff] %v688
        %721 = vst [vmem:[%s250 + $0x20] sm:$0xff] %v689
        %722 = vst [vmem:[%s250 + $0x28] sm:$0xff] %v690
        %723 = vst [vmem:[%s250 + $0x30] sm:$0xff] %v691
        %724 = vst [vmem:[%s250 + $0x38] sm:$0xff] %v692
        %725 = vst [vmem:[%s250 + $0x40] sm:$0xff] %v693
        %726 = vst [vmem:[%s250 + $0x48] sm:$0xff] %v694
        %727 = vst [vmem:[%s250 + $0x50] sm:$0xff] %v695
        %728 = vst [vmem:[%s250 + $0x58] sm:$0xff] %v696
        %729 = vst [vmem:[%s250 + $0x60] sm:$0xff] %v697
        %730 = vst [vmem:[%s250 + $0x68] sm:$0xff] %v698
        %731 = vst [vmem:[%s250 + $0x70] sm:$0xff] %v699
        %732 = vst [vmem:[%s250 + $0x78] sm:$0xff] %v700
        %733 = vst [vmem:[%s250 + $0x80] sm:$0xff] %v701
        %734 = vst [vmem:[%s250 + $0x88] sm:$0xff] %v702
        %735 = vst [vmem:[%s250 + $0x90] sm:$0xff] %v703
        %736 = vst [vmem:[%s250 + $0x98] sm:$0xff] %v704
        %737 = vst [vmem:[%s250 + $0xa0] sm:$0xff] %v705
        %738 = vst [vmem:[%s250 + $0xa8] sm:$0xff] %v706
        %739 = vst [vmem:[%s250 + $0xb0] sm:$0xff] %v707
        %740 = vst [vmem:[%s250 + $0xb8] sm:$0xff] %v708
        %741 = vst [vmem:[%s250 + $0xc0] sm:$0xff] %v709
        %742 = vst [vmem:[%s250 + $0xc8] sm:$0xff] %v710
        %743 = vst [vmem:[%s250 + $0xd0] sm:$0xff] %v711
        %744 = vst [vmem:[%s250 + $0xd8] sm:$0xff] %v712
        %745 = vst [vmem:[%s250 + $0xe0] sm:$0xff] %v713
        %746 = vst [vmem:[%s250 + $0xe8] sm:$0xff] %v714
        %747 = vst [vmem:[%s250 + $0xf0] sm:$0xff] %v715
        %748 = vst [vmem:[%s250 + $0xf8] sm:$0xff] %v716
        %s749 = sand.u32 %s132, 1
        %s750 = scalar_lea.sflag [#allocation4], %s749
        %s751 = sand.u32 %s132, 1
        %s752 = smul.addr %s751, 256
        %s753 = scalar_lea.vmem [#allocation7], %s752
        // Predicated region
        $region41: #{tpu_custom_call.1} parent=31 // pred_check
          %p754 = pneg %p142
        $region42: #{tpu_custom_call.1} parent=31 // pred_check_branch
          %756 = sbr.rel (%p754) target = $region44
        $region43: #{tpu_custom_call.1} parent=31 // pred_region
          %s757 = smul.u32 32, %s28
          %s759 = ssub.s32 4096, 4096
          %760 = vsyncadd %s750, %s759
          %s761 = sadd.s32 %s27, %s757
          %s762 = smul.addr %s26, 32
          %s763 = sadd.s32 %s761, %s762
          %s764 = smul.addr %s763, 128
          %s765 = scalar_lea.hbm %s3, %s764
          %s766 = sshll.u32 %s753, 4
          %s767 = int_to_ptr.vmem [resolvable:$true] %s766
          %772 = dma.vmem_to_hbm [thread:$0]  %s767, 4096, %s765, %s750, 128, 128, 8
        $region44: #{tpu_custom_call.1} parent=31 // pred_fallthru
          _
      $region32: #{tpu_custom_call.1} parent=5 // pred_fallthru
        _
      %p773 = scmp.le.s32.totalorder 2, %s16
      // Predicated region
      $region45: #{tpu_custom_call.1} parent=5 // pred_check
        %p774 = pneg %p773
      $region46: #{tpu_custom_call.1} parent=5 // pred_check_branch
        %776 = sbr.rel (%p774) target = $region48
      $region47: #{tpu_custom_call.1} parent=5 // pred_region
        %s777 = ssub.s32 %s16, 2
        // Predicated region
        $region49: #{tpu_custom_call.1} parent=47 // pred_check
          %p778 = pneg %p148
        $region50: #{tpu_custom_call.1} parent=47 // pred_check_branch
          %780 = sbr.rel (%p778) target = $region52
        $region51: #{tpu_custom_call.1} parent=47 // pred_region
          %s781 = sand.u32 %s133, 1
          %s782 = scalar_lea.sflag [#allocation4], %s781
          %s783 = sand.u32 %s133, 1
          %s784 = smul.addr %s783, 256
          %s785 = scalar_lea.vmem [#allocation7], %s784
          %786 = dma.done %s782, 4096
        $region52: #{tpu_custom_call.1} parent=47 // pred_fallthru
          _
      $region48: #{tpu_custom_call.1} parent=5 // pred_fallthru
        _
    $region6: #{tpu_custom_call.1} parent=1 // loop_footer
      %s20 = sadd.s32 1, %s16
    $region7: #{tpu_custom_call.1} parent=1 // loop_footer_branch
      %15 = sbr.rel target = $region3
    $region8: #{tpu_custom_call.1} parent=1 // loop_exit
      _
    %787 = vsyncpa [#allocation3], 1
    %s788 = scalar_lea.sflag [#allocation3], 1
    %789 = vsyncpa %s788, 1
    %790 = vsyncpa [#allocation6], 1
    %791 = vsyncpa [#allocation4], 1
    %s792 = scalar_lea.sflag [#allocation4], 1
    %793 = vsyncpa %s792, 1

</llo_original>
